<compile_context>
chip_gen: v5e
topology: v5e:2x2
jax: 0.10.0
libtpu: 0.0.40
codegen_flags: <defaults>
</compile_context>

<pallas_src>
import functools

import numpy as np
import jax
import jax.numpy as jnp
from jax.experimental import pallas as pl
from jax.experimental.pallas import tpu as pltpu


def _mae3d_kernel(logits_ref, meta_ref, out_ref):
    """Accumulates 4 partial sums into lanes 0..3 of out_ref (1, 1, 128):
       [ce_sum, ce_count, l1_sum, mask_count]."""
    i = pl.program_id(1)

    @pl.when(i == 0)
    def _():
        out_ref[...] = jnp.zeros_like(out_ref)

    x = logits_ref[...].astype(jnp.float32)      # [TR, C]  in-kernel upcast; HBM stays native
    meta = meta_ref[...]                         # [TR, 8]  packed per-row metadata (f32)

    tgt_f = meta[:, 0:1]                         # target class id (f32, exact for small C)
    node_m = meta[:, 1:2]                        # node mask (1/0); 0 on padded + BOS rows
    p0, p1, p2 = meta[:, 2:3], meta[:, 3:4], meta[:, 4:5]    # ori_pos  xyz
    o0, o1, o2 = meta[:, 5:6], meta[:, 6:7], meta[:, 7:8]    # node_output xyz

    tr, c = x.shape
    tgt = tgt_f.astype(jnp.int32)                # [TR, 1]
    col = jax.lax.broadcasted_iota(jnp.int32, (tr, c), 1)

    # --- per-row cross-entropy.  xs = x - rowmax is computed ONCE and reused for both
    #     the exp() and the one-hot target gather (saves a [TR,C] VALU op per element).
    row_max = jnp.max(x, axis=-1, keepdims=True)
    xs = x - row_max
    lse_s = jnp.log(jnp.sum(jnp.exp(xs), axis=-1, keepdims=True))
    tgt_s = jnp.sum(jnp.where(col == tgt, xs, 0.0), axis=-1, keepdims=True)
    ce = lse_s - tgt_s                           # == logsumexp(x) - x[target]

    # CE validity mask: masked node AND target != 0 (CrossEntropyLoss ignore_index=0).
    lv = node_m * (tgt != 0).astype(jnp.float32)

    # --- per-row L1 over xyz (node_output vs ori_pos) ---
    l1 = jnp.abs(o0 - p0) + jnp.abs(o1 - p1) + jnp.abs(o2 - p2)   # [TR, 1]

    # --- masked partial sums for this tile.  Use where() (not multiply) so garbage
    #     logits in ragged / out-of-range rows can never propagate NaN/Inf. ---
    ce_sum = jnp.sum(jnp.where(lv > 0.0, ce, 0.0), axis=0, keepdims=True)      # (1, 1)
    ce_cnt = jnp.sum(lv, axis=0, keepdims=True)
    l1_sum = jnp.sum(jnp.where(node_m > 0.0, l1, 0.0), axis=0, keepdims=True)
    m_cnt = jnp.sum(node_m, axis=0, keepdims=True)

    lane = jax.lax.broadcasted_iota(jnp.int32, (1, 1, 128), 2)
    upd = (jnp.where(lane == 0, ce_sum[None], 0.0)
           + jnp.where(lane == 1, ce_cnt[None], 0.0)
           + jnp.where(lane == 2, l1_sum[None], 0.0)
           + jnp.where(lane == 3, m_cnt[None], 0.0))
    out_ref[...] += upd


def _round_up(a, m):
    return ((a + m - 1) // m) * m


def _tpu_hw():
    """Best-effort (never-raising) hardware query: (physical VMEM bytes/core, TCs/chip)."""
    kind = ""
    try:
        kind = jax.devices()[0].device_kind.lower()
    except Exception:
        pass
    vmem = None
    try:
        vmem = int(pltpu.get_tpu_info().vmem_capacity_bytes)
    except Exception:
        vmem = None
    if vmem is None or vmem <= 0:
        # v5e/v6e have 128 MiB VMEM; assume the conservative 64 MiB (v7x) otherwise.
        vmem = (128 << 20) if ("v5" in kind or "v6" in kind) else (64 << 20)
    cores = 2 if ("v7" in kind or "7x" in kind) else 1   # 2 TCs/chip only on v7x
    return vmem, cores


@functools.partial(jax.jit, static_argnames=("atom_loss_coeff", "pos_loss_coeff"))
def mae3d_criterions_forward(x, node_mask, pos, logits, node_output, *,
                             atom_loss_coeff=1.0, pos_loss_coeff=1.0):
    """JAX/Pallas equivalent of MAE3dCriterions.forward.

    x:           [B, T, F]    int node features; x[:, :, 0] are target atom types
    node_mask:   [B, T, 1]    masked-node indicator (batch_data['node_mask'])
    pos:         [B, T, 3]    ground-truth positions (batch_data['pos'])
    logits:      [B, T+1, C]  type logits with a leading BOS row; NATIVE dtype (bf16 ok)
    node_output: [B, T, 3]    predicted positions
    """
    B, T, _ = x.shape
    Bp, T1, C = logits.shape
    assert Bp == B and T1 == T + 1
    assert C < (1 << 24)  # targets round-trip through an f32 meta lane (exact below 2^24)

    # Pack per-row metadata into a single [B, T+1, 8] f32 slab, shifted by one along the
    # sequence axis so that row s >= 1 of the *unsliced* logits carries the metadata of
    # node s-1.  Row s == 0 (the BOS row PyTorch drops via logits[:, 1:, :]) gets an
    # all-zero mask, so the big logits slice/copy is never materialized.
    tgt = x[:, :, 0].astype(jnp.float32)[..., None]                       # [B, T, 1]
    nm = (node_mask.reshape(B, T) != 0).astype(jnp.float32)[..., None]    # [B, T, 1]
    meta = jnp.concatenate(
        [tgt, nm, pos.astype(jnp.float32), node_output.astype(jnp.float32)],
        axis=-1)                                                          # [B, T, 8]
    meta = jnp.pad(meta, ((0, 0), (1, 0), (0, 0)))                        # [B, T+1, 8]

    R = B * (T + 1)
    logits_rows = logits.reshape(R, C)        # free reshape, keep native dtype
    meta_rows = meta.reshape(R, 8)

    # ---- generation-aware tiling ----------------------------------------------------
    phys_vmem, n_cores = _tpu_hw()
    P = n_cores                                # 2-way core split only where 2 TCs exist

    # Resident VMEM bytes per row of tile:
    #   logits: double-buffered, lane-padded to 128, native itemsize
    #   meta:   double-buffered, (TR, 8) f32 lane-padded to (TR, 128)
    #   temps:  ~3 x [TR, C] f32 in-kernel intermediates (x, xs, exp/where)
    c_lanes = _round_up(C, 128)
    l_item = int(logits.dtype.itemsize)
    per_row = 2 * c_lanes * l_item + 2 * 128 * 4 + 3 * c_lanes * 4
    budget = min(48 << 20, phys_vmem // 2)     # ~32 MiB/core on v7x, ~48 MiB on v5e/v6e
    TR = max(8, (budget // per_row) // 8 * 8)
    TR = int(min(TR, _round_up(pl.cdiv(R, P), 8)))

    num_tiles = pl.cdiv(R, TR)
    steps = pl.cdiv(num_tiles, P)
    R_pad = P * steps * TR
    meta_rows = jnp.pad(meta_rows, ((0, R_pad - R), (0, 0)))   # pad rows carry mask == 0
    last_tile = num_tiles - 1

    # Raise the scoped VMEM limit above the default so the large tiles actually compile,
    # while staying well inside physical VMEM (64 MiB/core on v7x, 128 MiB on v5e/v6e).
    est_vmem = TR * per_row + (2 << 20)
    vmem_limit = int(min(phys_vmem * 3 // 4, est_vmem + (16 << 20)))
    vmem_limit = max(vmem_limit, 32 << 20)

    cost = pl.CostEstimate(
        flops=int(6 * R * C + 16 * R),
        transcendentals=int(R * C),
        bytes_accessed=int(R * C * l_item + 2 * R_pad * 32 + P * 512))

    sums = pl.pallas_call(
        _mae3d_kernel,
        out_shape=jax.ShapeDtypeStruct((P, 1, 128), jnp.float32),
        grid=(P, steps),
        in_specs=[
            # Clamp the logits tile index so every block starts in-bounds.  Duplicated or
            # ragged rows contribute nothing: their (explicitly padded) meta mask is 0.
            pl.BlockSpec((TR, C), lambda p, i: (jnp.minimum(p * steps + i, last_tile), 0)),
            pl.BlockSpec((TR, 8), lambda p, i: (p * steps + i, 0)),
        ],
        out_specs=pl.BlockSpec((1, 1, 128), lambda p, i: (p, 0, 0)),
        compiler_params=pltpu.CompilerParams(
            dimension_semantics=("parallel", "arbitrary"),
            vmem_limit_bytes=vmem_limit),
        cost_estimate=cost,
    )(logits_rows, meta_rows)

    tot = jnp.sum(sums[:, 0, :], axis=0)          # combine per-core partials -> [128]
    ce_sum, ce_cnt, l1_sum, m_cnt = tot[0], tot[1], tot[2], tot[3]

    # Matches torch semantics (NaN if there are no valid / masked elements).
    type_loss = (ce_sum / ce_cnt) * atom_loss_coeff              # CE mean, ignore_index=0
    pos_loss = (l1_sum / (m_cnt * 3.0)) * pos_loss_coeff         # L1Loss(reduction='mean')
    return type_loss + pos_loss


if __name__ == "__main__":
    key = jax.random.PRNGKey(0)
    B, T, C, F = 2, 8, 32, 3
    atom_coeff, pos_coeff = 1.0, 0.5

    k1, k2, k3, k4, k5 = jax.random.split(key, 5)
    x = jax.random.randint(k1, (B, T, F), 0, C, dtype=jnp.int32)
    x = x.at[:, :2, 0].set(jnp.array([[3, 7], [5, 11]], jnp.int32))   # guarantee non-ignored targets
    node_mask = jax.random.bernoulli(k2, 0.6, (B, T))
    node_mask = node_mask.at[:, :2].set(True)                          # guarantee non-empty mask
    node_mask = node_mask[..., None].astype(jnp.int32)                 # [B, T, 1]
    pos = jax.random.normal(k3, (B, T, 3), jnp.float32)
    logits = jax.random.normal(k4, (B, T + 1, C), jnp.bfloat16)        # native bf16, no wrapper upcast
    node_output = jax.random.normal(k5, (B, T, 3), jnp.bfloat16)

    loss = mae3d_criterions_forward(x, node_mask, pos, logits, node_output,
                                    atom_loss_coeff=atom_coeff, pos_loss_coeff=pos_coeff)
    loss = jax.block_until_ready(loss)

    # ---- pure-numpy reference replicating the PyTorch gather semantics ----
    x_np = np.asarray(x)
    nm_np = np.asarray(node_mask)[..., 0].astype(bool)
    pos_np = np.asarray(pos, dtype=np.float32)
    out_np = np.asarray(jnp.asarray(node_output, jnp.float32))
    lg_np = np.asarray(jnp.asarray(logits, jnp.float32))

    targets = x_np[:, :, 0][nm_np]
    lrows = lg_np[:, 1:, :][nm_np]
    mx = lrows.max(-1, keepdims=True)
    lse = mx[:, 0] + np.log(np.exp(lrows - mx).sum(-1))
    ce = lse - lrows[np.arange(lrows.shape[0]), targets]
    valid = targets != 0
    ref_type = ce[valid].mean() * atom_coeff                         # ignore_index=0, mean
    ref_pos = np.abs(out_np[nm_np] - pos_np[nm_np]).mean() * pos_coeff
    ref_loss = ref_type + ref_pos

    np.testing.assert_allclose(float(loss), ref_loss, rtol=5e-4, atol=5e-4)
    print("KERNEL_OK")
</pallas_src>

<mosaic_0001>
module attributes {stable_mosaic.version = 11 : i64} {
  func.func @_mae3d_kernel(%arg0: i32, %arg1: i32, %arg2: memref<24x32xbf16, #tpu.memory_space<vmem>>, %arg3: memref<24x8xf32, #tpu.memory_space<vmem>>, %arg4: memref<1x1x128xf32, #tpu.memory_space<vmem>>) attributes {dimension_semantics = [#tpu.dimension_semantics<parallel>, #tpu.dimension_semantics<arbitrary>], iteration_bounds = array<i64: 1, 1>, scalar_prefetch = 0 : i64, scratch_operands = 0 : i64, tpu.core_type = #tpu.core_type<tc>, window_params = [{transform_indices = @transform_0, window_bounds = array<i64: 24, 32>}, {transform_indices = @transform_1, window_bounds = array<i64: 24, 8>}, {transform_indices = @transform_2, window_bounds = array<i64: 1, 1, 128>}]} {
    %c0_i32 = arith.constant 0 : i32
    %0 = arith.cmpi eq, %arg1, %c0_i32 : i32
    %1 = arith.extui %0 : i1 to i32
    %c0_i32_0 = arith.constant 0 : i32
    %2 = arith.cmpi ne, %1, %c0_i32_0 : i32
    scf.if %2 {
      %cst_27 = arith.constant 0.000000e+00 : f32
      %95 = vector.broadcast %cst_27 : f32 to vector<1x1x128xf32>
      %c0_28 = arith.constant 0 : index
      %c0_29 = arith.constant 0 : index
      %c0_30 = arith.constant 0 : index
      %96 = vector.load %arg4[%c0_28, %c0_29, %c0_30] : memref<1x1x128xf32, #tpu.memory_space<vmem>>, vector<1x1x128xf32>
      tpu.vector_store %arg4[%c0_28, %c0_29, %c0_30], %95 {strides = array<i32>} : memref<1x1x128xf32, #tpu.memory_space<vmem>>, vector<1x1x128xf32>,
    } else {
    }
    %c0 = arith.constant 0 : index
    %c0_1 = arith.constant 0 : index
    %3 = vector.load %arg2[%c0, %c0_1] : memref<24x32xbf16, #tpu.memory_space<vmem>>, vector<24x32xbf16>
    %4 = arith.extf %3 : vector<24x32xbf16> to vector<24x32xf32>
    %c0_2 = arith.constant 0 : index
    %c0_3 = arith.constant 0 : index
    %5 = vector.load %arg3[%c0_2, %c0_3] : memref<24x8xf32, #tpu.memory_space<vmem>>, vector<24x8xf32>
    %6 = vector.extract_strided_slice %5 {offsets = [0, 0], sizes = [24, 1], strides = [1, 1]} : vector<24x8xf32> to vector<24x1xf32>
    %7 = vector.extract_strided_slice %5 {offsets = [0, 1], sizes = [24, 1], strides = [1, 1]} : vector<24x8xf32> to vector<24x1xf32>
    %8 = vector.extract_strided_slice %5 {offsets = [0, 2], sizes = [24, 1], strides = [1, 1]} : vector<24x8xf32> to vector<24x1xf32>
    %9 = vector.extract_strided_slice %5 {offsets = [0, 3], sizes = [24, 1], strides = [1, 1]} : vector<24x8xf32> to vector<24x1xf32>
    %10 = vector.extract_strided_slice %5 {offsets = [0, 4], sizes = [24, 1], strides = [1, 1]} : vector<24x8xf32> to vector<24x1xf32>
    %11 = vector.extract_strided_slice %5 {offsets = [0, 5], sizes = [24, 1], strides = [1, 1]} : vector<24x8xf32> to vector<24x1xf32>
    %12 = vector.extract_strided_slice %5 {offsets = [0, 6], sizes = [24, 1], strides = [1, 1]} : vector<24x8xf32> to vector<24x1xf32>
    %13 = vector.extract_strided_slice %5 {offsets = [0, 7], sizes = [24, 1], strides = [1, 1]} : vector<24x8xf32> to vector<24x1xf32>
    %14 = arith.fptosi %6 : vector<24x1xf32> to vector<24x1xi32>
    %15 = tpu.iota {dimensions = array<i32: 1>} : vector<24x32xi32>
    %cst = arith.constant dense<0xFF800000> : vector<24xf32>
    %16 = vector.multi_reduction <maximumf>, %4, %cst [1] : vector<24x32xf32> to vector<24xf32>
    %17 = vector.shape_cast %16 : vector<24xf32> to vector<24x1xf32>
    %18 = vector.broadcast %17 : vector<24x1xf32> to vector<24x32xf32>
    %19 = arith.subf %4, %18 : vector<24x32xf32>
    %20 = math.exp %19 : vector<24x32xf32>
    %cst_4 = arith.constant dense<0.000000e+00> : vector<24xf32>
    %21 = vector.multi_reduction <add>, %20, %cst_4 [1] : vector<24x32xf32> to vector<24xf32>
    %22 = vector.shape_cast %21 : vector<24xf32> to vector<24x1xf32>
    %23 = math.log %22 : vector<24x1xf32>
    %24 = vector.broadcast %14 : vector<24x1xi32> to vector<24x32xi32>
    %25 = arith.cmpi eq, %15, %24 : vector<24x32xi32>
    %cst_5 = arith.constant 0.000000e+00 : f32
    %26 = vector.broadcast %cst_5 : f32 to vector<24x32xf32>
    %27 = arith.select %25, %19, %26 : vector<24x32xi1>, vector<24x32xf32>
    %cst_6 = arith.constant dense<0.000000e+00> : vector<24xf32>
    %28 = vector.multi_reduction <add>, %27, %cst_6 [1] : vector<24x32xf32> to vector<24xf32>
    %29 = vector.shape_cast %28 : vector<24xf32> to vector<24x1xf32>
    %30 = arith.subf %23, %29 : vector<24x1xf32>
    %c0_i32_7 = arith.constant 0 : i32
    %31 = vector.broadcast %c0_i32_7 : i32 to vector<24x1xi32>
    %32 = arith.cmpi ne, %14, %31 : vector<24x1xi32>
    %33 = arith.extui %32 : vector<24x1xi1> to vector<24x1xi32>
    %34 = arith.sitofp %33 : vector<24x1xi32> to vector<24x1xf32>
    %35 = arith.mulf %7, %34 : vector<24x1xf32>
    %36 = arith.subf %11, %8 : vector<24x1xf32>
    %37 = math.absf %36 : vector<24x1xf32>
    %38 = arith.subf %12, %9 : vector<24x1xf32>
    %39 = math.absf %38 : vector<24x1xf32>
    %40 = arith.addf %37, %39 : vector<24x1xf32>
    %41 = arith.subf %13, %10 : vector<24x1xf32>
    %42 = math.absf %41 : vector<24x1xf32>
    %43 = arith.addf %40, %42 : vector<24x1xf32>
    %cst_8 = arith.constant 0.000000e+00 : f32
    %44 = vector.broadcast %cst_8 : f32 to vector<24x1xf32>
    %45 = arith.cmpf ogt, %35, %44 : vector<24x1xf32>
    %cst_9 = arith.constant 0.000000e+00 : f32
    %46 = vector.broadcast %cst_9 : f32 to vector<24x1xf32>
    %47 = arith.select %45, %30, %46 : vector<24x1xi1>, vector<24x1xf32>
    %cst_10 = arith.constant dense<0.000000e+00> : vector<1xf32>
    %48 = vector.multi_reduction <add>, %47, %cst_10 [0] : vector<24x1xf32> to vector<1xf32>
    %49 = vector.shape_cast %48 : vector<1xf32> to vector<1x1xf32>
    %cst_11 = arith.constant dense<0.000000e+00> : vector<1xf32>
    %50 = vector.multi_reduction <add>, %35, %cst_11 [0] : vector<24x1xf32> to vector<1xf32>
    %51 = vector.shape_cast %50 : vector<1xf32> to vector<1x1xf32>
    %cst_12 = arith.constant 0.000000e+00 : f32
    %52 = vector.broadcast %cst_12 : f32 to vector<24x1xf32>
    %53 = arith.cmpf ogt, %7, %52 : vector<24x1xf32>
    %cst_13 = arith.constant 0.000000e+00 : f32
    %54 = vector.broadcast %cst_13 : f32 to vector<24x1xf32>
    %55 = arith.select %53, %43, %54 : vector<24x1xi1>, vector<24x1xf32>
    %cst_14 = arith.constant dense<0.000000e+00> : vector<1xf32>
    %56 = vector.multi_reduction <add>, %55, %cst_14 [0] : vector<24x1xf32> to vector<1xf32>
    %57 = vector.shape_cast %56 : vector<1xf32> to vector<1x1xf32>
    %cst_15 = arith.constant dense<0.000000e+00> : vector<1xf32>
    %58 = vector.multi_reduction <add>, %7, %cst_15 [0] : vector<24x1xf32> to vector<1xf32>
    %59 = vector.shape_cast %58 : vector<1xf32> to vector<1x1xf32>
    %60 = tpu.iota {dimensions = array<i32: 2>} : vector<1x1x128xi32>
    %c0_i32_16 = arith.constant 0 : i32
    %61 = vector.broadcast %c0_i32_16 : i32 to vector<1x1x128xi32>
    %62 = arith.cmpi eq, %60, %61 : vector<1x1x128xi32>
    %63 = vector.shape_cast %49 : vector<1x1xf32> to vector<1x1x1xf32>
    %cst_17 = arith.constant 0.000000e+00 : f32
    %64 = vector.shape_cast %63 : vector<1x1x1xf32> to vector<1x1x1xf32>
    %65 = vector.broadcast %64 : vector<1x1x1xf32> to vector<1x1x128xf32>
    %66 = vector.broadcast %cst_17 : f32 to vector<1x1x128xf32>
    %67 = arith.select %62, %65, %66 : vector<1x1x128xi1>, vector<1x1x128xf32>
    %c1_i32 = arith.constant 1 : i32
    %68 = vector.broadcast %c1_i32 : i32 to vector<1x1x128xi32>
    %69 = arith.cmpi eq, %60, %68 : vector<1x1x128xi32>
    %70 = vector.shape_cast %51 : vector<1x1xf32> to vector<1x1x1xf32>
    %cst_18 = arith.constant 0.000000e+00 : f32
    %71 = vector.shape_cast %70 : vector<1x1x1xf32> to vector<1x1x1xf32>
    %72 = vector.broadcast %71 : vector<1x1x1xf32> to vector<1x1x128xf32>
    %73 = vector.broadcast %cst_18 : f32 to vector<1x1x128xf32>
    %74 = arith.select %69, %72, %73 : vector<1x1x128xi1>, vector<1x1x128xf32>
    %75 = arith.addf %67, %74 : vector<1x1x128xf32>
    %c2_i32 = arith.constant 2 : i32
    %76 = vector.broadcast %c2_i32 : i32 to vector<1x1x128xi32>
    %77 = arith.cmpi eq, %60, %76 : vector<1x1x128xi32>
    %78 = vector.shape_cast %57 : vector<1x1xf32> to vector<1x1x1xf32>
    %cst_19 = arith.constant 0.000000e+00 : f32
    %79 = vector.shape_cast %78 : vector<1x1x1xf32> to vector<1x1x1xf32>
    %80 = vector.broadcast %79 : vector<1x1x1xf32> to vector<1x1x128xf32>
    %81 = vector.broadcast %cst_19 : f32 to vector<1x1x128xf32>
    %82 = arith.select %77, %80, %81 : vector<1x1x128xi1>, vector<1x1x128xf32>
    %83 = arith.addf %75, %82 : vector<1x1x128xf32>
    %c3_i32 = arith.constant 3 : i32
    %84 = vector.broadcast %c3_i32 : i32 to vector<1x1x128xi32>
    %85 = arith.cmpi eq, %60, %84 : vector<1x1x128xi32>
    %86 = vector.shape_cast %59 : vector<1x1xf32> to vector<1x1x1xf32>
    %cst_20 = arith.constant 0.000000e+00 : f32
    %87 = vector.shape_cast %86 : vector<1x1x1xf32> to vector<1x1x1xf32>
    %88 = vector.broadcast %87 : vector<1x1x1xf32> to vector<1x1x128xf32>
    %89 = vector.broadcast %cst_20 : f32 to vector<1x1x128xf32>
    %90 = arith.select %85, %88, %89 : vector<1x1x128xi1>, vector<1x1x128xf32>
    %91 = arith.addf %83, %90 : vector<1x1x128xf32>
    %c0_21 = arith.constant 0 : index
    %c0_22 = arith.constant 0 : index
    %c0_23 = arith.constant 0 : index
    %92 = vector.load %arg4[%c0_21, %c0_22, %c0_23] : memref<1x1x128xf32, #tpu.memory_space<vmem>>, vector<1x1x128xf32>
    %93 = arith.addf %92, %91 : vector<1x1x128xf32>
    %c0_24 = arith.constant 0 : index
    %c0_25 = arith.constant 0 : index
    %c0_26 = arith.constant 0 : index
    %94 = vector.load %arg4[%c0_24, %c0_25, %c0_26] : memref<1x1x128xf32, #tpu.memory_space<vmem>>, vector<1x1x128xf32>
    tpu.vector_store %arg4[%c0_24, %c0_25, %c0_26], %93 {strides = array<i32>} : memref<1x1x128xf32, #tpu.memory_space<vmem>>, vector<1x1x128xf32>,
    return
  }
  func.func @transform_0(%arg0: i32, %arg1: i32) -> (i32, i32) {
    %c1_i32 = arith.constant 1 : i32
    %0 = arith.muli %arg0, %c1_i32 : i32
    %1 = arith.addi %0, %arg1 : i32
    %c0_i32 = arith.constant 0 : i32
    %2 = arith.minsi %1, %c0_i32 : i32
    %c0_i32_0 = arith.constant 0 : i32
    %c0_i32_1 = arith.constant 0 : i32
    return %2, %c0_i32_0 : i32, i32
  }
  func.func @transform_1(%arg0: i32, %arg1: i32) -> (i32, i32) {
    %c1_i32 = arith.constant 1 : i32
    %0 = arith.muli %arg0, %c1_i32 : i32
    %1 = arith.addi %0, %arg1 : i32
    %c0_i32 = arith.constant 0 : i32
    %c0_i32_0 = arith.constant 0 : i32
    return %1, %c0_i32 : i32, i32
  }
  func.func @transform_2(%arg0: i32, %arg1: i32) -> (i32, i32, i32) {
    %c0_i32 = arith.constant 0 : i32
    %c0_i32_0 = arith.constant 0 : i32
    %c0_i32_1 = arith.constant 0 : i32
    return %arg0, %c0_i32, %c0_i32_0 : i32, i32, i32
  }
}

</mosaic_0001>

<llo_original>
// kernel: mae3d_criterions_forward.1
$region0: #{mae3d_criterions_forward.1}
  #allocation0 [shape = 'u32[]', space=smem, size = 0x4, offset = 0x4, fixed_abs, tag = 'smem constant byte address 0x4 - core index']
  #allocation1 [shape = 'u32[72,128]{1,0:T(1,128)}', space=vmem, size = 0x9000, scoped, tag = 'internal scratch']
  %s0 = inlined_call_operand.vmem [shape: bf16[18,32], index: 0, kind: input, shape index: {}]
  %s1 = inlined_call_operand.vmem [shape: f32[24,8], index: 1, kind: input, shape index: {}]
  %s2 = inlined_call_operand.vmem [shape: f32[1,1,128], index: 2, kind: output, shape index: {}]
  %s3 = sld [smem:[#allocation0]]
  $region22: #{mae3d_criterions_forward.1} parent=0
    _
  %s5 = ssub.s32 1, %s3
  %s6 = scalar_select 0, %s5, %s3
  // Predicated region
  $region2: #{mae3d_criterions_forward.1} parent=0 // pred_check
    _
  $region3: #{mae3d_criterions_forward.1} parent=0 // pred_check_branch
    %8 = sbr.rel (0) target = $region5
  $region4: #{mae3d_criterions_forward.1} parent=0 // pred_region
    %s9 = sadd.s32 0, 0
    %p10 = scmp.lt.s32.totalorder %s9, 0
    %s11 = scalar_select %p10, %s9, 0
    %s12 = smul.u32 3, %s11
    %p13 = scmp.lt.s32.totalorder %s12, 2
    %s14 = scalar_select %p13, %s12, 2
    %s15 = smul.addr %s14, 4
    %s16 = scalar_lea.vmem %s0, %s15
    %s17 = sadd.s32 0, 0
    %p18 = scmp.lt.s32.totalorder %s17, 0
    %s19 = scalar_select %p18, %s17, 0
    %s20 = smul.u32 3, %s19
  $region5: #{mae3d_criterions_forward.1} parent=0 // pred_fallthru
    _
  // Predicated region
  $region6: #{mae3d_criterions_forward.1} parent=0 // pred_check
    _
  $region7: #{mae3d_criterions_forward.1} parent=0 // pred_check_branch
    %22 = sbr.rel (0) target = $region9
  $region8: #{mae3d_criterions_forward.1} parent=0 // pred_region
    %s23 = sadd.s32 0, 0
    %s24 = smul.u32 3, %s23
    %p25 = scmp.lt.s32.totalorder %s24, 2
    %s26 = scalar_select %p25, %s24, 2
    %s27 = smul.addr %s26, 8
    %s28 = scalar_lea.vmem %s1, %s27
    %s29 = sadd.s32 0, 0
    %s30 = smul.u32 3, %s29
  $region9: #{mae3d_criterions_forward.1} parent=0 // pred_fallthru
    _
  %s31 = sadd.s32 0, 0
  %p32 = scmp.lt.s32.totalorder %s31, 0
  %s33 = scalar_select %p32, %s31, 0
  %s34 = smul.u32 3, %s33
  %p35 = scmp.lt.s32.totalorder %s34, 2
  %s36 = scalar_select %p35, %s34, 2
  %s37 = smul.addr %s36, 4
  %s38 = scalar_lea.vmem %s0, %s37
  %s39 = sadd.s32 0, 0
  %s40 = smul.u32 3, %s39
  %p41 = scmp.lt.s32.totalorder %s40, 2
  %s42 = scalar_select %p41, %s40, 2
  %s43 = smul.addr %s42, 8
  %s44 = scalar_lea.vmem %s1, %s43
  %s45 = sadd.s32 0, 0
  %p46 = scmp.lt.s32.totalorder %s45, 0
  %s47 = scalar_select %p46, %s45, 0
  %s48 = smul.u32 3, %s47
  %p49 = scmp.lt.s32.totalorder %s48, 2
  %s50 = scalar_select %p49, %s48, 2
  %s51 = smul.addr %s50, 4
  %s52 = scalar_lea.vmem %s0, %s51
  %s53 = sadd.s32 0, 0
  %p54 = scmp.lt.s32.totalorder %s53, 0
  %s55 = scalar_select %p54, %s53, 0
  %s56 = smul.u32 3, %s55
  %s57 = sadd.s32 0, 0
  %s58 = smul.u32 3, %s57
  %p59 = scmp.lt.s32.totalorder %s58, 2
  %s60 = scalar_select %p59, %s58, 2
  %s61 = smul.addr %s60, 8
  %s62 = scalar_lea.vmem %s1, %s61
  %s63 = sadd.s32 0, 0
  %s64 = smul.u32 3, %s63
  %p65 = scmp.eq.s32.totalorder 0, 0
  // Predicated region
  $region10: #{mae3d_criterions_forward.1} parent=0 // pred_check
    %p66 = pneg %p65
  $region11: #{mae3d_criterions_forward.1} parent=0 // pred_check_branch
    %68 = sbr.rel (%p66) target = $region13
  $region12: #{mae3d_criterions_forward.1} parent=0 // pred_region
    %69 = vst [vmem:[%s2] sm:$0x1] 0.0
  $region13: #{mae3d_criterions_forward.1} parent=0 // pred_fallthru
    _
  %v70 = vld [vmem:[%s52] sm:$0xf]
  %v71 = vld [vmem:[%s52 + $0x4] sm:$0xf]
  %v72 = vld [vmem:[%s52 + $0x8] sm:$0xf]
  %v73 = vunpack.c.l.bf16 %v70
  %v74 = vunpack.c.l.bf16 %v71
  %v75 = vunpack.c.l.bf16 %v72
  %v76 = vld [vmem:[%s62] sm:$0xff]
  %v77 = vld [vmem:[%s62 + $0x8] sm:$0xff]
  %v78 = vld [vmem:[%s62 + $0x10] sm:$0xff]
  %v79 = vcvt.f32.s32.to.zero.pseudo %v76
  %v80 = vcvt.f32.s32.to.zero.pseudo %v77
  %v81 = vcvt.f32.s32.to.zero.pseudo %v78
  %v82 = vlaneseq
  %v83 = vand.u32 %v82, 127
  %vm84 = vcmask 261120
  %v85 = vsel %vm84, %v73, -inf
  %86 = vmax.xlane.f32.xlu0 %v85
  %v87 = vpop.xlane.xlu0 %86
  %v88 = vsel %vm84, %v74, -inf
  %89 = vmax.xlane.f32.xlu0 %v88
  %v90 = vpop.xlane.xlu0 %89
  %v91 = vsel %vm84, %v75, -inf
  %92 = vmax.xlane.f32.xlu0 %v91
  %v93 = vpop.xlane.xlu0 %92
  %v94 = vsub.f32 %v73, %v87
  %v95 = vsub.f32 %v74, %v90
  %v96 = vsub.f32 %v75, %v93
  %v97 = vmul.f32 %v94, 1.442695
  %v98 = vpow.pop %v97
  %v99 = vmul.f32 %v95, 1.442695
  %v100 = vpow.pop %v99
  %v101 = vmul.f32 %v96, 1.442695
  %v102 = vpow.pop %v101
  %v103 = vsel %vm84, %v98, 0.0
  %104 = vadd.xlane.f32.xlu0 %v103
  %v105 = vpop.xlane.xlu0 %104
  %v106 = vsel %vm84, %v100, 0.0
  %107 = vadd.xlane.f32.xlu0 %v106
  %v108 = vpop.xlane.xlu0 %107
  %v109 = vsel %vm84, %v102, 0.0
  %110 = vadd.xlane.f32.xlu0 %v109
  %v111 = vpop.xlane.xlu0 %110
  %v112 = vlog2.pop %v105
  %v113 = vmul.f32 %v112, 0.6931472
  %v114 = vlog2.pop %v108
  %v115 = vmul.f32 %v114, 0.6931472
  %v116 = vlog2.pop %v111
  %v117 = vmul.f32 %v116, 0.6931472
  %118 = vset.pattern.permute.xlu0 0
  %119 = vperm.xlu0 %118, %v79
  %v120 = vpop.permute.xlu0 %119
  %121 = vset.pattern.permute.xlu0 0
  %122 = vperm.xlu0 %121, %v80
  %v123 = vpop.permute.xlu0 %122
  %124 = vset.pattern.permute.xlu0 0
  %125 = vperm.xlu0 %124, %v81
  %v126 = vpop.permute.xlu0 %125
  %vm127 = vcmp.eq.s32.totalorder %v83, %v120
  %vm128 = vcmp.eq.s32.totalorder %v83, %v123
  %vm129 = vcmp.eq.s32.totalorder %v83, %v126
  %v130 = vsel %vm127, %v94, 0.0
  %v131 = vsel %vm128, %v95, 0.0
  %v132 = vsel %vm129, %v96, 0.0
  %v133 = vsel %vm84, %v130, 0.0
  %134 = vadd.xlane.f32.xlu0 %v133
  %v135 = vpop.xlane.xlu0 %134
  %v136 = vsel %vm84, %v131, 0.0
  %137 = vadd.xlane.f32.xlu0 %v136
  %v138 = vpop.xlane.xlu0 %137
  %v139 = vsel %vm84, %v132, 0.0
  %140 = vadd.xlane.f32.xlu0 %v139
  %v141 = vpop.xlane.xlu0 %140
  %v142 = vsub.f32 %v113, %v135
  %v143 = vsub.f32 %v115, %v138
  %v144 = vsub.f32 %v117, %v141
  %vm145 = vcmp.ne.s32.totalorder %v79, 0
  %vm146 = vcmp.ne.s32.totalorder %v80, 0
  %vm147 = vcmp.ne.s32.totalorder %v81, 0
  %v148 = vsel %vm145, 1, 0
  %v149 = vsel %vm146, 1, 0
  %v150 = vsel %vm147, 1, 0
  %v151 = vcvt.s32.f32 %v148
  %v152 = vcvt.s32.f32 %v149
  %v153 = vcvt.s32.f32 %v150
  %157 = vrot.lane.b32.xlu0 %v151, 1
  %v158 = vpop.permute.xlu0 %157
  %159 = vrot.lane.b32.xlu0 %v152, 1
  %v160 = vpop.permute.xlu0 %159
  %161 = vrot.lane.b32.xlu0 %v153, 1
  %v162 = vpop.permute.xlu0 %161
  %v166 = vmul.f32 %v76, %v158
  %v167 = vmul.f32 %v77, %v160
  %v168 = vmul.f32 %v78, %v162
  %172 = vrot.lane.b32.xlu0 %v76, 3
  %v173 = vpop.permute.xlu0 %172
  %174 = vrot.lane.b32.xlu0 %v77, 3
  %v175 = vpop.permute.xlu0 %174
  %176 = vrot.lane.b32.xlu0 %v78, 3
  %v177 = vpop.permute.xlu0 %176
  %v181 = vsub.f32 %v76, %v173
  %v182 = vsub.f32 %v77, %v175
  %v183 = vsub.f32 %v78, %v177
  %v184 = vand.u32 2147483647, %v181
  %v185 = vand.u32 2147483647, %v182
  %v186 = vand.u32 2147483647, %v183
  %190 = vrot.lane.b32.xlu0 %v184, 127
  %v191 = vpop.permute.xlu0 %190
  %192 = vrot.lane.b32.xlu0 %v185, 127
  %v193 = vpop.permute.xlu0 %192
  %194 = vrot.lane.b32.xlu0 %v186, 127
  %v195 = vpop.permute.xlu0 %194
  %v199 = vadd.f32 %v184, %v191
  %v200 = vadd.f32 %v185, %v193
  %v201 = vadd.f32 %v186, %v195
  %202 = vrot.lane.b32.xlu0 %v184, 126
  %v203 = vpop.permute.xlu0 %202
  %204 = vrot.lane.b32.xlu0 %v185, 126
  %v205 = vpop.permute.xlu0 %204
  %206 = vrot.lane.b32.xlu0 %v186, 126
  %v207 = vpop.permute.xlu0 %206
  %v211 = vadd.f32 %v199, %v203
  %v212 = vadd.f32 %v200, %v205
  %v213 = vadd.f32 %v201, %v207
  %vm214 = vcmp.gt.f32.partialorder %v166, 0.0
  %vm215 = vcmp.gt.f32.partialorder %v167, 0.0
  %vm216 = vcmp.gt.f32.partialorder %v168, 0.0
  %v217 = vsel %vm214, %v142, 0.0
  %v218 = vsel %vm215, %v143, 0.0
  %v219 = vsel %vm216, %v144, 0.0
  %vm220 = vcmask 15368
  %v221 = vsel %vm220, %v217, 0.0
  %v222 = vsel %vm220, %v218, 0.0
  %v223 = vadd.f32 %v221, %v222
  %v224 = vsel %vm220, %v219, 0.0
  %v225 = vadd.f32 %v223, %v224
  %v226 = vrot.slane %v225, 4
  %v227 = vadd.f32 %v225, %v226
  %v228 = vrot.slane %v227, 2
  %v229 = vadd.f32 %v227, %v228
  %v230 = vrot.slane %v229, 1
  %v231 = vadd.f32 %v229, %v230
  %v232 = vsel %vm220, %v166, 0.0
  %v233 = vsel %vm220, %v167, 0.0
  %v234 = vadd.f32 %v232, %v233
  %v235 = vsel %vm220, %v168, 0.0
  %v236 = vadd.f32 %v234, %v235
  %v237 = vrot.slane %v236, 4
  %v238 = vadd.f32 %v236, %v237
  %v239 = vrot.slane %v238, 2
  %v240 = vadd.f32 %v238, %v239
  %v241 = vrot.slane %v240, 1
  %v242 = vadd.f32 %v240, %v241
  %vm243 = vcmp.gt.f32.partialorder %v76, 0.0
  %vm244 = vcmp.gt.f32.partialorder %v77, 0.0
  %vm245 = vcmp.gt.f32.partialorder %v78, 0.0
  %249 = vrot.lane.b32.xlu0 %v211, 124
  %v250 = vpop.permute.xlu0 %249
  %251 = vrot.lane.b32.xlu0 %v212, 124
  %v252 = vpop.permute.xlu0 %251
  %253 = vrot.lane.b32.xlu0 %v213, 124
  %v254 = vpop.permute.xlu0 %253
  %v258 = vsel %vm243, %v250, 0.0
  %v259 = vsel %vm244, %v252, 0.0
  %v260 = vsel %vm245, %v254, 0.0
  %v261 = vsel %vm220, %v258, 0.0
  %v262 = vsel %vm220, %v259, 0.0
  %v263 = vadd.f32 %v261, %v262
  %v264 = vsel %vm220, %v260, 0.0
  %v265 = vadd.f32 %v263, %v264
  %v266 = vrot.slane %v265, 4
  %v267 = vadd.f32 %v265, %v266
  %v268 = vrot.slane %v267, 2
  %v269 = vadd.f32 %v267, %v268
  %v270 = vrot.slane %v269, 1
  %v271 = vadd.f32 %v269, %v270
  %v272 = vsel %vm220, %v76, 0.0
  %v273 = vsel %vm220, %v77, 0.0
  %v274 = vadd.f32 %v272, %v273
  %v275 = vsel %vm220, %v78, 0.0
  %v276 = vadd.f32 %v274, %v275
  %v277 = vrot.slane %v276, 4
  %v278 = vadd.f32 %v276, %v277
  %v279 = vrot.slane %v278, 2
  %v280 = vadd.f32 %v278, %v279
  %v281 = vrot.slane %v280, 1
  %v282 = vadd.f32 %v280, %v281
  %vm283 = vcmp.eq.s32.totalorder %v83, 0
  %285 = vset.pattern.permute.xlu0 1
  %286 = vperm.xlu0 %285, %v231
  %v287 = vpop.permute.xlu0 %286
  %v289 = vsel %vm283, %v287, 0.0
  %vm290 = vcmp.eq.s32.totalorder %v83, 1
  %292 = vset.pattern.permute.xlu0 1
  %293 = vperm.xlu0 %292, %v242
  %v294 = vpop.permute.xlu0 %293
  %v296 = vsel %vm290, %v294, 0.0
  %v297 = vadd.f32 %v289, %v296
  %vm298 = vcmp.eq.s32.totalorder %v83, 2
  %300 = vset.pattern.permute.xlu0 1
  %301 = vperm.xlu0 %300, %v271
  %v302 = vpop.permute.xlu0 %301
  %v304 = vsel %vm298, %v302, 0.0
  %v305 = vadd.f32 %v297, %v304
  %vm306 = vcmp.eq.s32.totalorder %v83, 3
  %308 = vset.pattern.permute.xlu0 1
  %309 = vperm.xlu0 %308, %v282
  %v310 = vpop.permute.xlu0 %309
  %v312 = vsel %vm306, %v310, 0.0
  %v313 = vadd.f32 %v305, %v312
  %v314 = vld [vmem:[%s2] sm:$0x1]
  %v315 = vadd.f32 %v314, %v313
  %316 = vst [vmem:[%s2] sm:$0x1] %v315
  // Predicated region
  $region14: #{mae3d_criterions_forward.1} parent=0 // pred_check
    _
  $region15: #{mae3d_criterions_forward.1} parent=0 // pred_check_branch
    %318 = sbr.rel (0) target = $region17
  $region16: #{mae3d_criterions_forward.1} parent=0 // pred_region
    _
  $region17: #{mae3d_criterions_forward.1} parent=0 // pred_fallthru
    _
  // Predicated region
  $region18: #{mae3d_criterions_forward.1} parent=0 // pred_check
    _
  $region19: #{mae3d_criterions_forward.1} parent=0 // pred_check_branch
    %320 = sbr.rel (0) target = $region21
  $region20: #{mae3d_criterions_forward.1} parent=0 // pred_region
    _
  $region21: #{mae3d_criterions_forward.1} parent=0 // pred_fallthru
    _

</llo_original>
